<compile_context>
chip_gen: v6e
topology: v6e:2x2x1
jax: 0.10.0
libtpu: 0.0.40
codegen_flags: <defaults>
</compile_context>

<pallas_src>
import jax
import jax.numpy as jnp
from jax import lax
from jax.experimental import pallas as pl
from jax.experimental.pallas import tpu as pltpu


def _round_up(x, m):
    return (x + m - 1) // m * m


def _gated_attention_kernel(h_ref, vuw_ref, vub_ref, aw_ref, ab_ref, out_ref):
    D = vuw_ref.shape[1] // 2

    # Fused V|U projection on the MXU (bf16 inputs, f32 accumulation).
    pre = (jnp.dot(h_ref[...], vuw_ref[...],
                   preferred_element_type=jnp.float32)
           + vub_ref[...])                                      # (tn, 2D) f32

    # Single full-width tanh (one EUP pass over packed vregs).  The wrapper
    # folded the 0.5 of sigmoid(x)=0.5*(1+tanh(x/2)) into the U half, so:
    #   lanes [0, D)  : tanh(V)
    #   lanes [D, 2D) : tanh(U/2)  ->  sigmoid(U) = 0.5*(1 + tanh(U/2))
    t = jnp.tanh(pre)
    gated = t[:, :D] * (0.5 * (1.0 + t[:, D:]))                 # (tn, D) f32

    # attention_weights: A^T = W_a(Kp8, D) . gated^T -> (Kp8, tn).
    # dot_general "NT" contracts gated's lane dim; the store along the row
    # tile (last dim, multiple of 128 lanes) is fully lane-dense.
    out_t = lax.dot_general(aw_ref[...], gated,
                            (((1,), (1,)), ((), ())),
                            preferred_element_type=jnp.float32)
    out_ref[...] = (out_t + ab_ref[...]).astype(out_ref.dtype)


def _pick_tile_n(N, L, kp8, *, target_steps=8, budget_bytes=8 << 20):
    """Row-tile size: ~target_steps grid steps, rows a multiple of 128 (rows
    become output lanes), capped so the double-buffered per-step footprint
    (H tile bf16 + out tile f32) stays ~<= budget_bytes — safe under v5e's
    16 MiB scoped-VMEM default (v6e/v7x have 32 MiB)."""
    per_row = 2 * (L * 2 + kp8 * 4)          # 2 buffers x (bf16 H row + f32 out col)
    cap = max(128, (budget_bytes // per_row) // 128 * 128)
    tile = max(128, _round_up(pl.cdiv(N, target_steps), 128))
    return min(tile, cap)


def gated_attention_layer(H, params, *, tile_n=None):
    """H: (N, L) float32.  params: dict of torch-convention weights.
    Returns A: (N, K) float32 (same contract as the torch forward)."""
    N, L = H.shape
    D = params["v_w"].shape[0]
    K = params["a_w"].shape[0]
    D2 = 2 * D
    Kp8 = _round_up(K, 8)            # pad K to 8 sublanes only (not 128 lanes)

    if tile_n is None:
        tile_n = _pick_tile_n(N, L, Kp8)
    grid_n = pl.cdiv(N, tile_n)
    if grid_n > 1 and grid_n % 2:
        grid_n += 1                  # even split across v7x's two TensorCores
    Np = grid_n * tile_n

    # Pad rows to the grid; padded rows produce finite values, sliced off below.
    H_p = H if Np == N else jnp.pad(H, ((0, Np - N), (0, 0)))
    H_p = H_p.astype(jnp.bfloat16)   # bf16 MXU path, halves the dominant DMA

    # Fused V|U weights/biases (torch (out,in) -> (in,out)); the 0.5 sigmoid
    # scale is folded into the U half so the kernel needs a single tanh.
    vu_w = jnp.concatenate([params["v_w"].T, 0.5 * params["u_w"].T],
                           axis=1).astype(jnp.bfloat16)            # (L, 2D)
    vu_b = jnp.concatenate([params["v_b"], 0.5 * params["u_b"]]
                           ).reshape(1, D2).astype(jnp.float32)    # (1, 2D)

    # attention_weights kept at its live size; only K padded to 8 sublanes.
    aw = jnp.zeros((Kp8, D), jnp.float32).at[:K, :].set(params["a_w"])
    ab = jnp.zeros((Kp8, 1), jnp.float32).at[:K, 0].set(params["a_b"])

    cost = pl.CostEstimate(
        flops=2 * Np * L * D2 + 2 * Np * D * Kp8,
        transcendentals=Np * D2,
        bytes_accessed=(2 * Np * L + 4 * Kp8 * Np
                        + 2 * L * D2 + 4 * D2 + 4 * Kp8 * D + 4 * Kp8),
    )

    out_t = pl.pallas_call(
        _gated_attention_kernel,
        out_shape=jax.ShapeDtypeStruct((Kp8, Np), jnp.float32),
        grid_spec=pltpu.PrefetchScalarGridSpec(
            num_scalar_prefetch=0,
            grid=(grid_n,),
            in_specs=[
                pl.BlockSpec((tile_n, L), lambda i: (i, 0)),   # H tile (bf16)
                pl.BlockSpec((L, D2), lambda i: (0, 0)),       # fused V|U weight
                pl.BlockSpec((1, D2), lambda i: (0, 0)),       # fused V|U bias
                pl.BlockSpec((Kp8, D), lambda i: (0, 0)),      # attn weight
                pl.BlockSpec((Kp8, 1), lambda i: (0, 0)),      # attn bias
            ],
            out_specs=pl.BlockSpec((Kp8, tile_n), lambda i: (0, i)),
        ),
        compiler_params=pltpu.CompilerParams(
            dimension_semantics=("parallel",)),
        cost_estimate=cost,
    )(H_p, vu_w, vu_b, aw, ab)

    # (Kp8, Np) -> (N, K).  (K, N) is the natural layout for the downstream
    # softmax over instances; we transpose the small slab to match torch.
    return out_t[:K, :N].T


def _init_params(key, L, D, K):
    """Deterministic synthetic init (uniform, Linear-like scale)."""
    ks = jax.random.split(key, 6)

    def lin(kw, kb, fan_in, fan_out):
        bound = 1.0 / jnp.sqrt(fan_in)
        w = jax.random.uniform(kw, (fan_out, fan_in), jnp.float32, -bound, bound)
        b = jax.random.uniform(kb, (fan_out,), jnp.float32, -bound, bound)
        return w, b

    v_w, v_b = lin(ks[0], ks[1], L, D)
    u_w, u_b = lin(ks[2], ks[3], L, D)
    a_w, a_b = lin(ks[4], ks[5], D, K)
    return dict(v_w=v_w, v_b=v_b, u_w=u_w, u_b=u_b, a_w=a_w, a_b=a_b)


def _reference(H, p):
    a_v = jnp.tanh(H @ p["v_w"].T + p["v_b"])
    a_u = jax.nn.sigmoid(H @ p["u_w"].T + p["u_b"])
    return (a_v * a_u) @ p["a_w"].T + p["a_b"]


if __name__ == "__main__":
    # N instances in the bag, L input features, D hidden, K attention heads.
    # N=256 exercises a 2-step even "parallel" grid.
    N, L, D, K = 256, 32, 64, 4
    key = jax.random.PRNGKey(0)
    k_h, k_p = jax.random.split(key)
    H = jax.random.normal(k_h, (N, L), jnp.float32)
    params = _init_params(k_p, L, D, K)

    A = gated_attention_layer(H, params)
    A = jax.block_until_ready(A)

    A_ref = _reference(H, params)
    assert A.shape == (N, K)
    # bf16 operands on the L->2D projection => looser tolerance vs f32 reference.
    assert jnp.allclose(A, A_ref, atol=2e-2, rtol=2e-2), "mismatch vs reference"
    print("KERNEL_OK")
</pallas_src>

<mosaic_0001>
module attributes {stable_mosaic.version = 11 : i64} {
  func.func @_gated_attention_kernel(%arg0: i32, %arg1: memref<128x32xbf16, #tpu.memory_space<vmem>>, %arg2: memref<32x128xbf16, #tpu.memory_space<vmem>>, %arg3: memref<1x128xf32, #tpu.memory_space<vmem>>, %arg4: memref<8x64xf32, #tpu.memory_space<vmem>>, %arg5: memref<8x1xf32, #tpu.memory_space<vmem>>, %arg6: memref<8x128xf32, #tpu.memory_space<vmem>>) attributes {dimension_semantics = [#tpu.dimension_semantics<parallel>], iteration_bounds = array<i64: 2>, scalar_prefetch = 0 : i64, scratch_operands = 0 : i64, tpu.core_type = #tpu.core_type<tc>, window_params = [{transform_indices = @transform_0, window_bounds = array<i64: 128, 32>}, {pipeline_mode = #tpu.pipeline_mode<synchronous>, transform_indices = @transform_1, window_bounds = array<i64: 32, 128>}, {pipeline_mode = #tpu.pipeline_mode<synchronous>, transform_indices = @transform_2, window_bounds = array<i64: 1, 128>}, {pipeline_mode = #tpu.pipeline_mode<synchronous>, transform_indices = @transform_3, window_bounds = array<i64: 8, 64>}, {pipeline_mode = #tpu.pipeline_mode<synchronous>, transform_indices = @transform_4, window_bounds = array<i64: 8, 1>}, {transform_indices = @transform_5, window_bounds = array<i64: 8, 128>}]} {
    %c0 = arith.constant 0 : index
    %c0_0 = arith.constant 0 : index
    %0 = vector.load %arg1[%c0, %c0_0] : memref<128x32xbf16, #tpu.memory_space<vmem>>, vector<128x32xbf16>
    %c0_1 = arith.constant 0 : index
    %c0_2 = arith.constant 0 : index
    %1 = vector.load %arg2[%c0_1, %c0_2] : memref<32x128xbf16, #tpu.memory_space<vmem>>, vector<32x128xbf16>
    %cst = arith.constant dense<0.000000e+00> : vector<128x128xf32>
    %2 = tpu.matmul %0, %1, %cst {dimension_numbers = #tpu.dot_dimension_numbers<[1], [0], [0], [1], [0, 0, 1, 1], [], []>} : vector<128x32xbf16>, vector<32x128xbf16>, vector<128x128xf32> -> vector<128x128xf32>
    %c0_3 = arith.constant 0 : index
    %c0_4 = arith.constant 0 : index
    %3 = vector.load %arg3[%c0_3, %c0_4] : memref<1x128xf32, #tpu.memory_space<vmem>>, vector<1x128xf32>
    %4 = vector.broadcast %3 : vector<1x128xf32> to vector<128x128xf32>
    %5 = arith.addf %2, %4 : vector<128x128xf32>
    %6 = math.tanh %5 : vector<128x128xf32>
    %7 = vector.extract_strided_slice %6 {offsets = [0, 0], sizes = [128, 64], strides = [1, 1]} : vector<128x128xf32> to vector<128x64xf32>
    %8 = vector.extract_strided_slice %6 {offsets = [0, 64], sizes = [128, 64], strides = [1, 1]} : vector<128x128xf32> to vector<128x64xf32>
    %cst_5 = arith.constant 1.000000e+00 : f32
    %9 = vector.broadcast %cst_5 : f32 to vector<128x64xf32>
    %10 = arith.addf %9, %8 : vector<128x64xf32>
    %cst_6 = arith.constant 5.000000e-01 : f32
    %11 = vector.broadcast %cst_6 : f32 to vector<128x64xf32>
    %12 = arith.mulf %11, %10 : vector<128x64xf32>
    %13 = arith.mulf %7, %12 : vector<128x64xf32>
    %c0_7 = arith.constant 0 : index
    %c0_8 = arith.constant 0 : index
    %14 = vector.load %arg4[%c0_7, %c0_8] : memref<8x64xf32, #tpu.memory_space<vmem>>, vector<8x64xf32>
    %cst_9 = arith.constant dense<0.000000e+00> : vector<8x128xf32>
    %15 = tpu.matmul %14, %13, %cst_9 {dimension_numbers = #tpu.dot_dimension_numbers<[1], [1], [0], [0], [0, 0, 1, 0], [], []>} : vector<8x64xf32>, vector<128x64xf32>, vector<8x128xf32> -> vector<8x128xf32>
    %c0_10 = arith.constant 0 : index
    %c0_11 = arith.constant 0 : index
    %16 = vector.load %arg5[%c0_10, %c0_11] : memref<8x1xf32, #tpu.memory_space<vmem>>, vector<8x1xf32>
    %17 = vector.broadcast %16 : vector<8x1xf32> to vector<8x128xf32>
    %18 = arith.addf %15, %17 : vector<8x128xf32>
    %c0_12 = arith.constant 0 : index
    %c0_13 = arith.constant 0 : index
    %19 = vector.load %arg6[%c0_12, %c0_13] : memref<8x128xf32, #tpu.memory_space<vmem>>, vector<8x128xf32>
    tpu.vector_store %arg6[%c0_12, %c0_13], %18 {strides = array<i32>} : memref<8x128xf32, #tpu.memory_space<vmem>>, vector<8x128xf32>,
    return
  }
  func.func @transform_0(%arg0: i32) -> (i32, i32) {
    %c0_i32 = arith.constant 0 : i32
    %c0_i32_0 = arith.constant 0 : i32
    return %arg0, %c0_i32 : i32, i32
  }
  func.func @transform_1(%arg0: i32) -> (i32, i32) {
    %c0_i32 = arith.constant 0 : i32
    %c0_i32_0 = arith.constant 0 : i32
    %c0_i32_1 = arith.constant 0 : i32
    return %c0_i32, %c0_i32_0 : i32, i32
  }
  func.func @transform_2(%arg0: i32) -> (i32, i32) {
    %c0_i32 = arith.constant 0 : i32
    %c0_i32_0 = arith.constant 0 : i32
    %c0_i32_1 = arith.constant 0 : i32
    return %c0_i32, %c0_i32_0 : i32, i32
  }
  func.func @transform_3(%arg0: i32) -> (i32, i32) {
    %c0_i32 = arith.constant 0 : i32
    %c0_i32_0 = arith.constant 0 : i32
    %c0_i32_1 = arith.constant 0 : i32
    return %c0_i32, %c0_i32_0 : i32, i32
  }
  func.func @transform_4(%arg0: i32) -> (i32, i32) {
    %c0_i32 = arith.constant 0 : i32
    %c0_i32_0 = arith.constant 0 : i32
    %c0_i32_1 = arith.constant 0 : i32
    return %c0_i32, %c0_i32_0 : i32, i32
  }
  func.func @transform_5(%arg0: i32) -> (i32, i32) {
    %c0_i32 = arith.constant 0 : i32
    %c0_i32_0 = arith.constant 0 : i32
    return %c0_i32, %arg0 : i32, i32
  }
}

</mosaic_0001>

<llo_original>
// kernel: tpu_custom_call.1
$region0: #{tpu_custom_call.1}
  #allocation0 [shape = 'u32[]', space=smem, size = 0x4, offset = 0x4, fixed_abs, tag = 'smem constant byte address 0x4 - core index']
  #allocation1 [shape = 'u32[144,128]{1,0:T(1,128)}', space=vmem, size = 0x12000, scoped, tag = 'internal scratch']
  %s0 = inlined_call_operand.vmem [shape: bf16[256,32], index: 0, kind: input, shape index: {}]
  %s1 = inlined_call_operand.vmem [shape: bf16[32,128], index: 1, kind: input, shape index: {}]
  %s2 = inlined_call_operand.vmem [shape: f32[1,128], index: 2, kind: input, shape index: {}]
  %s3 = inlined_call_operand.vmem [shape: f32[8,64], index: 3, kind: input, shape index: {}]
  %s4 = inlined_call_operand.vmem [shape: f32[8,1], index: 4, kind: input, shape index: {}]
  %s5 = inlined_call_operand.hbm [shape: f32[8,256], index: 5, kind: output, shape index: {}]
  %s6 = sld [smem:[#allocation0]]
  $region53: #{tpu_custom_call.1} parent=0
    _
  %s8 = ssub.s32 1, %s6
  %s9 = scalar_select 0, %s8, %s6
  $region1: #{tpu_custom_call.1} parent=0
    #allocation2 [shape = 'u8[8192]{0}', space=vmem, size = 0x2000, scoped, tag = 'output window, operand 0']
    #allocation3 [shape = 's32[2]{0}', space=sflag, size = 0x8, scoped, tag = 'scoped memory for tpu_custom_call.1']
    %10 = vsyncpa [#allocation3], 0
    %s11 = scalar_lea.sflag [#allocation3], 1
    %12 = vsyncpa %s11, 0
    loop: start=0, step=1, limit=4
    $region2: #{tpu_custom_call.1} parent=1 // loop_pre_header
      _
    $region3: #{tpu_custom_call.1} parent=1 // loop_header
      %s14 = sphi 0, %s18
      %p15 = scmp.ge.s32.totalorder %s14, 4
      %s24 = sphi 0, %s26
      %s27 = sphi 0, %s24
      %s28 = sphi 0, %s27
      %s44 = sphi 0, %s28
      %s48 = sphi 0, %s48
      %s50 = sphi 0, %s48
      %s51 = sphi 0, %s50
      %s65 = sphi 0, %s51
      %s69 = sphi 0, %s69
      %s71 = sphi 0, %s69
      %s72 = sphi 0, %s71
      %s86 = sphi 0, %s72
      %s90 = sphi 0, %s90
      %s92 = sphi 0, %s90
      %s93 = sphi 0, %s92
      %s107 = sphi 0, %s93
      %s111 = sphi 0, %s111
      %s113 = sphi 0, %s111
      %s114 = sphi 0, %s113
      %s128 = sphi 0, %s114
      %s134 = sphi 0, %s136
      %s137 = sphi 0, %s134
      %s138 = sphi 0, %s137
      %s154 = sphi 0, %s138
    $region4: #{tpu_custom_call.1} parent=1 // loop_header_branch
      %17 = sbr.rel (%p15) target = $region8
    $region5: #{tpu_custom_call.1} parent=1 // loop_body
      %s19 = ssub.s32 %s14, 1
      %s20 = ssub.s32 %s14, 2
      %s21 = sadd.s32 %s14, 1
      %s22 = ssub.s32 %s14, %s21
      %p23 = scmp.eq.s32.totalorder %s22, 0
      %s25 = sadd.s32 %s24, 1
      %s26 = scalar_select %p23, %s24, %s25
      %p29 = pneg %p23
      %p30 = scmp.eq.s32.totalorder %s14, 1
      %p31 = por %p29, %p30
      %p32 = scmp.ne.s32.totalorder %s24, %s27
      %p33 = scmp.eq.s32.totalorder %s14, 0
      %p34 = por %p32, %p33
      %p35 = scmp.ne.s32.totalorder %s24, %s27
      %p36 = scmp.eq.s32.totalorder %s19, 1
      %p37 = por %p35, %p36
      %p38 = scmp.ne.s32.totalorder %s27, %s28
      %p39 = scmp.eq.s32.totalorder %s19, 0
      %p40 = por %p38, %p39
      %p41 = scmp.ne.s32.totalorder %s27, %s28
      %p42 = scmp.eq.s32.totalorder %s20, 1
      %p43 = por %p41, %p42
      %p45 = scmp.ne.s32.totalorder %s28, %s44
      %p46 = scmp.eq.s32.totalorder %s20, 0
      %p47 = por %p45, %p46
      %s49 = sadd.s32 %s48, 1
      %p52 = scmp.eq.s32.totalorder %s14, 1
      %p53 = scmp.ne.s32.totalorder %s48, %s50
      %p54 = scmp.eq.s32.totalorder %s14, 0
      %p55 = por %p53, %p54
      %p56 = scmp.ne.s32.totalorder %s48, %s50
      %p57 = scmp.eq.s32.totalorder %s19, 1
      %p58 = por %p56, %p57
      %p59 = scmp.ne.s32.totalorder %s50, %s51
      %p60 = scmp.eq.s32.totalorder %s19, 0
      %p61 = por %p59, %p60
      %p62 = scmp.ne.s32.totalorder %s50, %s51
      %p63 = scmp.eq.s32.totalorder %s20, 1
      %p64 = por %p62, %p63
      %p66 = scmp.ne.s32.totalorder %s51, %s65
      %p67 = scmp.eq.s32.totalorder %s20, 0
      %p68 = por %p66, %p67
      %s70 = sadd.s32 %s69, 1
      %p73 = scmp.eq.s32.totalorder %s14, 1
      %p74 = scmp.ne.s32.totalorder %s69, %s71
      %p75 = scmp.eq.s32.totalorder %s14, 0
      %p76 = por %p74, %p75
      %p77 = scmp.ne.s32.totalorder %s69, %s71
      %p78 = scmp.eq.s32.totalorder %s19, 1
      %p79 = por %p77, %p78
      %p80 = scmp.ne.s32.totalorder %s71, %s72
      %p81 = scmp.eq.s32.totalorder %s19, 0
      %p82 = por %p80, %p81
      %p83 = scmp.ne.s32.totalorder %s71, %s72
      %p84 = scmp.eq.s32.totalorder %s20, 1
      %p85 = por %p83, %p84
      %p87 = scmp.ne.s32.totalorder %s72, %s86
      %p88 = scmp.eq.s32.totalorder %s20, 0
      %p89 = por %p87, %p88
      %s91 = sadd.s32 %s90, 1
      %p94 = scmp.eq.s32.totalorder %s14, 1
      %p95 = scmp.ne.s32.totalorder %s90, %s92
      %p96 = scmp.eq.s32.totalorder %s14, 0
      %p97 = por %p95, %p96
      %p98 = scmp.ne.s32.totalorder %s90, %s92
      %p99 = scmp.eq.s32.totalorder %s19, 1
      %p100 = por %p98, %p99
      %p101 = scmp.ne.s32.totalorder %s92, %s93
      %p102 = scmp.eq.s32.totalorder %s19, 0
      %p103 = por %p101, %p102
      %p104 = scmp.ne.s32.totalorder %s92, %s93
      %p105 = scmp.eq.s32.totalorder %s20, 1
      %p106 = por %p104, %p105
      %p108 = scmp.ne.s32.totalorder %s93, %s107
      %p109 = scmp.eq.s32.totalorder %s20, 0
      %p110 = por %p108, %p109
      %s112 = sadd.s32 %s111, 1
      %p115 = scmp.eq.s32.totalorder %s14, 1
      %p116 = scmp.ne.s32.totalorder %s111, %s113
      %p117 = scmp.eq.s32.totalorder %s14, 0
      %p118 = por %p116, %p117
      %p119 = scmp.ne.s32.totalorder %s111, %s113
      %p120 = scmp.eq.s32.totalorder %s19, 1
      %p121 = por %p119, %p120
      %p122 = scmp.ne.s32.totalorder %s113, %s114
      %p123 = scmp.eq.s32.totalorder %s19, 0
      %p124 = por %p122, %p123
      %p125 = scmp.ne.s32.totalorder %s113, %s114
      %p126 = scmp.eq.s32.totalorder %s20, 1
      %p127 = por %p125, %p126
      %p129 = scmp.ne.s32.totalorder %s114, %s128
      %p130 = scmp.eq.s32.totalorder %s20, 0
      %p131 = por %p129, %p130
      %s132 = ssub.s32 %s14, %s21
      %p133 = scmp.eq.s32.totalorder %s132, 0
      %s135 = sadd.s32 %s134, 1
      %s136 = scalar_select %p133, %s134, %s135
      %p139 = pneg %p133
      %p140 = scmp.eq.s32.totalorder %s14, 1
      %p141 = por %p139, %p140
      %p142 = scmp.ne.s32.totalorder %s134, %s137
      %p143 = scmp.eq.s32.totalorder %s14, 0
      %p144 = por %p142, %p143
      %p145 = scmp.ne.s32.totalorder %s134, %s137
      %p146 = scmp.eq.s32.totalorder %s19, 1
      %p147 = por %p145, %p146
      %p148 = scmp.ne.s32.totalorder %s137, %s138
      %p149 = scmp.eq.s32.totalorder %s19, 0
      %p150 = por %p148, %p149
      %p151 = scmp.ne.s32.totalorder %s137, %s138
      %p152 = scmp.eq.s32.totalorder %s20, 1
      %p153 = por %p151, %p152
      %p155 = scmp.ne.s32.totalorder %s138, %s154
      %p156 = scmp.eq.s32.totalorder %s20, 0
      %p157 = por %p155, %p156
      %p158 = scmp.le.s32.totalorder 1, %s14
      %p159 = scmp.lt.s32.totalorder %s14, 3
      %p160 = pnand %p158, %p159
      %p161 = pneg %p160
      // Predicated region
      $region9: #{tpu_custom_call.1} parent=5 // pred_check
        _
      $region10: #{tpu_custom_call.1} parent=5 // pred_check_branch
        %163 = sbr.rel (%p160) target = $region12
      $region11: #{tpu_custom_call.1} parent=5 // pred_region
        %s164 = ssub.s32 %s14, 1
        // Predicated region
        $region13: #{tpu_custom_call.1} parent=11 // pred_check
          %p165 = pneg %p61
        $region14: #{tpu_custom_call.1} parent=11 // pred_check_branch
          %167 = sbr.rel (%p165) target = $region16
        $region15: #{tpu_custom_call.1} parent=11 // pred_region
          _
        $region16: #{tpu_custom_call.1} parent=11 // pred_fallthru
          _
        // Predicated region
        $region17: #{tpu_custom_call.1} parent=11 // pred_check
          %p168 = pneg %p82
        $region18: #{tpu_custom_call.1} parent=11 // pred_check_branch
          %170 = sbr.rel (%p168) target = $region20
        $region19: #{tpu_custom_call.1} parent=11 // pred_region
          _
        $region20: #{tpu_custom_call.1} parent=11 // pred_fallthru
          _
        // Predicated region
        $region21: #{tpu_custom_call.1} parent=11 // pred_check
          %p171 = pneg %p103
        $region22: #{tpu_custom_call.1} parent=11 // pred_check_branch
          %173 = sbr.rel (%p171) target = $region24
        $region23: #{tpu_custom_call.1} parent=11 // pred_region
          _
        $region24: #{tpu_custom_call.1} parent=11 // pred_fallthru
          _
        // Predicated region
        $region25: #{tpu_custom_call.1} parent=11 // pred_check
          %p174 = pneg %p124
        $region26: #{tpu_custom_call.1} parent=11 // pred_check_branch
          %176 = sbr.rel (%p174) target = $region28
        $region27: #{tpu_custom_call.1} parent=11 // pred_region
          _
        $region28: #{tpu_custom_call.1} parent=11 // pred_fallthru
          _
      $region12: #{tpu_custom_call.1} parent=5 // pred_fallthru
        _
      %p177 = scmp.lt.s32.totalorder %s14, 2
      // Predicated region
      $region29: #{tpu_custom_call.1} parent=5 // pred_check
        %p178 = pneg %p177
      $region30: #{tpu_custom_call.1} parent=5 // pred_check_branch
        %180 = sbr.rel (%p178) target = $region32
      $region31: #{tpu_custom_call.1} parent=5 // pred_region
        // Predicated region
        $region33: #{tpu_custom_call.1} parent=31 // pred_check
          %p181 = pneg %p34
        $region34: #{tpu_custom_call.1} parent=31 // pred_check_branch
          %183 = sbr.rel (%p181) target = $region36
        $region35: #{tpu_custom_call.1} parent=31 // pred_region
          %s184 = smul.u32 16, %s14
          %p185 = scmp.lt.s32.totalorder %s184, 31
          %s186 = scalar_select %p185, %s184, 31
          %s187 = smul.addr %s186, 4
          %s188 = scalar_lea.vmem %s0, %s187
          %s189 = smul.u32 16, %s14
        $region36: #{tpu_custom_call.1} parent=31 // pred_fallthru
          _
      $region32: #{tpu_custom_call.1} parent=5 // pred_fallthru
        _
      %p190 = scmp.le.s32.totalorder 1, %s14
      %p191 = scmp.lt.s32.totalorder %s14, 3
      %p192 = pnand %p190, %p191
      %p193 = pneg %p192
      // Predicated region
      $region37: #{tpu_custom_call.1} parent=5 // pred_check
        _
      $region38: #{tpu_custom_call.1} parent=5 // pred_check_branch
        %195 = sbr.rel (%p192) target = $region40
      $region39: #{tpu_custom_call.1} parent=5 // pred_region
        %s196 = ssub.s32 %s14, 1
        %s197 = smul.u32 16, %s19
        %p198 = scmp.lt.s32.totalorder %s197, 31
        %s199 = scalar_select %p198, %s197, 31
        %s200 = smul.addr %s199, 4
        %s201 = scalar_lea.vmem %s0, %s200
        %p202 = pneg %p40
        %p203 = pneg %p37
        %p204 = pneg %p61
        %p205 = pneg %p58
        %p206 = pneg %p82
        %p207 = pneg %p79
        %p208 = pneg %p103
        %p209 = pneg %p100
        %p210 = pneg %p124
        %p211 = pneg %p121
        %p212 = pneg %p150
        %p213 = pneg %p147
        %s214 = sand.u32 %s137, 1
        %s215 = scalar_lea.sflag [#allocation3], %s214
        %s216 = sand.u32 %s137, 1
        %s217 = smul.addr %s216, 8
        %s218 = scalar_lea.vmem [#allocation2], %s217
        %s219 = smul.u32 16, %s19
        %p220 = scmp.lt.s32.totalorder %s219, 31
        %s221 = scalar_select %p220, %s219, 31
        %s222 = smul.addr %s221, 4
        %s223 = scalar_lea.vmem %s0, %s222
        %s224 = smul.u32 16, %s19
        %v226 = vld [vmem:[%s223] sm:$0xf]
        %v227 = vld [vmem:[%s223 + $0x4] sm:$0xf]
        %v228 = vld [vmem:[%s223 + $0x8] sm:$0xf]
        %v229 = vld [vmem:[%s223 + $0xc] sm:$0xf]
        %v230 = vld [vmem:[%s223 + $0x10] sm:$0xf]
        %v231 = vld [vmem:[%s223 + $0x14] sm:$0xf]
        %v232 = vld [vmem:[%s223 + $0x18] sm:$0xf]
        %v233 = vld [vmem:[%s223 + $0x1c] sm:$0xf]
        %v234 = vld [vmem:[%s223 + $0x20] sm:$0xf]
        %v235 = vld [vmem:[%s223 + $0x24] sm:$0xf]
        %v236 = vld [vmem:[%s223 + $0x28] sm:$0xf]
        %v237 = vld [vmem:[%s223 + $0x2c] sm:$0xf]
        %v238 = vld [vmem:[%s223 + $0x30] sm:$0xf]
        %v239 = vld [vmem:[%s223 + $0x34] sm:$0xf]
        %v240 = vld [vmem:[%s223 + $0x38] sm:$0xf]
        %v241 = vld [vmem:[%s223 + $0x3c] sm:$0xf]
        %v242 = vld [vmem:[%s1] sm:$0xf]
        %v243 = vld [vmem:[%s1 + $0x4] sm:$0xf]
        %v244 = vld [vmem:[%s1 + $0x8] sm:$0xf]
        %v245 = vld [vmem:[%s1 + $0xc] sm:$0xf]
        %v246 = vld [vmem:[%s2] sm:$0x1]
        %v248 = vlaneseq
        %v249 = vshrl.u32 %v248, 7
        %v250 = vsub.s32 0, %v249
        %v251 = vrot.slane %v246, %v250
        %v269 = vunpack.c.l.b16 %v226
        %v270 = vunpack.c.l.b16 %v227
        %v271 = vunpack.c.l.b16 %v228
        %v272 = vunpack.c.l.b16 %v229
        %v273 = vunpack.c.l.b16 %v230
        %v274 = vunpack.c.l.b16 %v231
        %v275 = vunpack.c.l.b16 %v232
        %v276 = vunpack.c.l.b16 %v233
        %v277 = vunpack.c.l.b16 %v234
        %v278 = vunpack.c.l.b16 %v235
        %v279 = vunpack.c.l.b16 %v236
        %v280 = vunpack.c.l.b16 %v237
        %v281 = vunpack.c.l.b16 %v238
        %v282 = vunpack.c.l.b16 %v239
        %v283 = vunpack.c.l.b16 %v240
        %v284 = vunpack.c.l.b16 %v241
        %v285 = vpack.c.b16 %v270, %v269
        %v286 = vpack.c.b16 %v272, %v271
        %v287 = vpack.c.b16 %v274, %v273
        %v288 = vpack.c.b16 %v276, %v275
        %v289 = vpack.c.b16 %v278, %v277
        %v290 = vpack.c.b16 %v280, %v279
        %v291 = vpack.c.b16 %v282, %v281
        %v292 = vpack.c.b16 %v284, %v283
        %v297 = vunpack.c.l.b16 %v242
        %v298 = vunpack.c.l.b16 %v243
        %v299 = vunpack.c.l.b16 %v244
        %v300 = vunpack.c.l.b16 %v245
        %v301 = vpack.c.b16 %v298, %v297
        %v302 = vpack.c.b16 %v300, %v299
        %vm305 = vcmask 261120
        %v307 = vsel %vm305, %v285, 0
        %v310 = vsel %vm305, %v286, 0
        %v313 = vsel %vm305, %v287, 0
        %v316 = vsel %vm305, %v288, 0
        %v319 = vsel %vm305, %v289, 0
        %v322 = vsel %vm305, %v290, 0
        %v325 = vsel %vm305, %v291, 0
        %v328 = vsel %vm305, %v292, 0
        %330 = vmatprep.subr.bf16.mxu0 0
        %331 = vmatpush1.bf16.msra.mxu0 0
        %332 = vmatprep.subr.bf16.mxu0 0
        %333 = vmatpush1.bf16.msra.mxu0 0
        %334 = vmatprep.subr.bf16.mxu0 0
        %335 = vmatpush1.bf16.msra.mxu0 0
        %336 = vmatprep.subr.bf16.mxu0 0
        %337 = vmatpush1.bf16.msra.mxu0 0
        %338 = vmatprep.subr.bf16.mxu0 0
        %339 = vmatpush1.bf16.msra.mxu0 0
        %340 = vmatprep.subr.bf16.mxu0 0
        %341 = vmatpush1.bf16.msra.mxu0 0
        %342 = vmatprep.subr.bf16.mxu0 0
        %343 = vmatpush1.bf16.msra.mxu0 %v302
        %344 = vmatprep.subr.bf16.mxu0 0
        %345 = vmatpush1.bf16.msra.mxu0 %v301
        %346 = vmatprep.subr.bf16.mxu0 0
        %347 = vmatpush2.bf16.msra.mxu0 0
        %348 = vmatprep.subr.bf16.mxu0 0
        %349 = vmatpush2.bf16.msra.mxu0 0
        %350 = vmatprep.subr.bf16.mxu0 0
        %351 = vmatpush2.bf16.msra.mxu0 0
        %352 = vmatprep.subr.bf16.mxu0 0
        %353 = vmatpush2.bf16.msra.mxu0 0
        %354 = vmatprep.subr.bf16.mxu0 0
        %355 = vmatpush2.bf16.msra.mxu0 0
        %356 = vmatprep.subr.bf16.mxu0 0
        %357 = vmatpush2.bf16.msra.mxu0 0
        %358 = vmatprep.subr.bf16.mxu0 0
        %359 = vmatpush2.bf16.msra.mxu0 0
        %360 = vmatprep.subr.bf16.mxu0 0
        %361 = vmatpush2.bf16.msra.mxu0 0
        %362 = vmatprep.mubr.bf16.mxu0 0
        %363 = vmatmul.mubr.bf16.gmra.mxu0 %v307
        %v364 = vpop.f32.mrf.mxu0
        %v365 = vadd.f32 %v251, %v364
        %v366 = vpop.f32.mrf.mxu0
        %v367 = vpop.f32.mrf.mxu0
        %v368 = vadd.f32 %v251, %v367
        %v369 = vpop.f32.mrf.mxu0
        %370 = vmatprep.mubr.bf16.mxu0 0
        %371 = vmatmul.mubr.bf16.gmra.mxu0 %v310
        %v372 = vpop.f32.mrf.mxu0
        %v373 = vadd.f32 %v251, %v372
        %v374 = vpop.f32.mrf.mxu0
        %v375 = vpop.f32.mrf.mxu0
        %v376 = vadd.f32 %v251, %v375
        %v377 = vpop.f32.mrf.mxu0
        %378 = vmatprep.mubr.bf16.mxu0 0
        %379 = vmatmul.mubr.bf16.gmra.mxu0 %v313
        %v380 = vpop.f32.mrf.mxu0
        %v381 = vadd.f32 %v251, %v380
        %v382 = vpop.f32.mrf.mxu0
        %v383 = vpop.f32.mrf.mxu0
        %v384 = vadd.f32 %v251, %v383
        %v385 = vpop.f32.mrf.mxu0
        %386 = vmatprep.mubr.bf16.mxu0 0
        %387 = vmatmul.mubr.bf16.gmra.mxu0 %v316
        %v388 = vpop.f32.mrf.mxu0
        %v389 = vadd.f32 %v251, %v388
        %v390 = vpop.f32.mrf.mxu0
        %v391 = vpop.f32.mrf.mxu0
        %v392 = vadd.f32 %v251, %v391
        %v393 = vpop.f32.mrf.mxu0
        %394 = vmatprep.mubr.bf16.mxu0 0
        %395 = vmatmul.mubr.bf16.gmra.mxu0 %v319
        %v396 = vpop.f32.mrf.mxu0
        %v397 = vadd.f32 %v251, %v396
        %v398 = vpop.f32.mrf.mxu0
        %v399 = vpop.f32.mrf.mxu0
        %v400 = vadd.f32 %v251, %v399
        %v401 = vpop.f32.mrf.mxu0
        %402 = vmatprep.mubr.bf16.mxu0 0
        %403 = vmatmul.mubr.bf16.gmra.mxu0 %v322
        %v404 = vpop.f32.mrf.mxu0
        %v405 = vadd.f32 %v251, %v404
        %v406 = vpop.f32.mrf.mxu0
        %v407 = vpop.f32.mrf.mxu0
        %v408 = vadd.f32 %v251, %v407
        %v409 = vpop.f32.mrf.mxu0
        %410 = vmatprep.mubr.bf16.mxu0 0
        %411 = vmatmul.mubr.bf16.gmra.mxu0 %v325
        %v412 = vpop.f32.mrf.mxu0
        %v413 = vadd.f32 %v251, %v412
        %v414 = vpop.f32.mrf.mxu0
        %v415 = vpop.f32.mrf.mxu0
        %v416 = vadd.f32 %v251, %v415
        %v417 = vpop.f32.mrf.mxu0
        %418 = vmatprep.mubr.bf16.mxu0 0
        %419 = vmatmul.mubr.bf16.gmra.mxu0 %v328
        %v420 = vpop.f32.mrf.mxu0
        %v421 = vadd.f32 %v251, %v420
        %v422 = vpop.f32.mrf.mxu0
        %v423 = vpop.f32.mrf.mxu0
        %v424 = vadd.f32 %v251, %v423
        %v425 = vpop.f32.mrf.mxu0
        %426 = vdwg.mxu0
        %v427 = vtanh.pop %v365
        %v428 = vtanh.pop %v368
        %v429 = vtanh.pop %v373
        %v430 = vtanh.pop %v376
        %v431 = vtanh.pop %v381
        %v432 = vtanh.pop %v384
        %v433 = vtanh.pop %v389
        %v434 = vtanh.pop %v392
        %v435 = vtanh.pop %v397
        %v436 = vtanh.pop %v400
        %v437 = vtanh.pop %v405
        %v438 = vtanh.pop %v408
        %v439 = vtanh.pop %v413
        %v440 = vtanh.pop %v416
        %v441 = vtanh.pop %v421
        %v442 = vtanh.pop %v424
        %v443 = vadd.f32 %v427, 1.0
        %v444 = vadd.f32 %v428, 1.0
        %v445 = vadd.f32 %v429, 1.0
        %v446 = vadd.f32 %v430, 1.0
        %v447 = vadd.f32 %v431, 1.0
        %v448 = vadd.f32 %v432, 1.0
        %v449 = vadd.f32 %v433, 1.0
        %v450 = vadd.f32 %v434, 1.0
        %v451 = vadd.f32 %v435, 1.0
        %v452 = vadd.f32 %v436, 1.0
        %v453 = vadd.f32 %v437, 1.0
        %v454 = vadd.f32 %v438, 1.0
        %v455 = vadd.f32 %v439, 1.0
        %v456 = vadd.f32 %v440, 1.0
        %v457 = vadd.f32 %v441, 1.0
        %v458 = vadd.f32 %v442, 1.0
        %v459 = vmul.f32 %v443, 0.5
        %v460 = vmul.f32 %v444, 0.5
        %v461 = vmul.f32 %v445, 0.5
        %v462 = vmul.f32 %v446, 0.5
        %v463 = vmul.f32 %v447, 0.5
        %v464 = vmul.f32 %v448, 0.5
        %v465 = vmul.f32 %v449, 0.5
        %v466 = vmul.f32 %v450, 0.5
        %v467 = vmul.f32 %v451, 0.5
        %v468 = vmul.f32 %v452, 0.5
        %v469 = vmul.f32 %v453, 0.5
        %v470 = vmul.f32 %v454, 0.5
        %v471 = vmul.f32 %v455, 0.5
        %v472 = vmul.f32 %v456, 0.5
        %v473 = vmul.f32 %v457, 0.5
        %v474 = vmul.f32 %v458, 0.5
        %491 = vrot.lane.b32.xlu0 %v459, 64
        %v492 = vpop.permute.xlu0 %491
        %493 = vrot.lane.b32.xlu0 %v460, 64
        %v494 = vpop.permute.xlu0 %493
        %495 = vrot.lane.b32.xlu0 %v461, 64
        %v496 = vpop.permute.xlu0 %495
        %497 = vrot.lane.b32.xlu0 %v462, 64
        %v498 = vpop.permute.xlu0 %497
        %499 = vrot.lane.b32.xlu0 %v463, 64
        %v500 = vpop.permute.xlu0 %499
        %501 = vrot.lane.b32.xlu0 %v464, 64
        %v502 = vpop.permute.xlu0 %501
        %503 = vrot.lane.b32.xlu0 %v465, 64
        %v504 = vpop.permute.xlu0 %503
        %505 = vrot.lane.b32.xlu0 %v466, 64
        %v506 = vpop.permute.xlu0 %505
        %507 = vrot.lane.b32.xlu0 %v467, 64
        %v508 = vpop.permute.xlu0 %507
        %509 = vrot.lane.b32.xlu0 %v468, 64
        %v510 = vpop.permute.xlu0 %509
        %511 = vrot.lane.b32.xlu0 %v469, 64
        %v512 = vpop.permute.xlu0 %511
        %513 = vrot.lane.b32.xlu0 %v470, 64
        %v514 = vpop.permute.xlu0 %513
        %515 = vrot.lane.b32.xlu0 %v471, 64
        %v516 = vpop.permute.xlu0 %515
        %517 = vrot.lane.b32.xlu0 %v472, 64
        %v518 = vpop.permute.xlu0 %517
        %519 = vrot.lane.b32.xlu0 %v473, 64
        %v520 = vpop.permute.xlu0 %519
        %521 = vrot.lane.b32.xlu0 %v474, 64
        %v522 = vpop.permute.xlu0 %521
        %v539 = vmul.f32 %v427, %v492
        %v540 = vmul.f32 %v428, %v494
        %v541 = vmul.f32 %v429, %v496
        %v542 = vmul.f32 %v430, %v498
        %v543 = vmul.f32 %v431, %v500
        %v544 = vmul.f32 %v432, %v502
        %v545 = vmul.f32 %v433, %v504
        %v546 = vmul.f32 %v434, %v506
        %v547 = vmul.f32 %v435, %v508
        %v548 = vmul.f32 %v436, %v510
        %v549 = vmul.f32 %v437, %v512
        %v550 = vmul.f32 %v438, %v514
        %v551 = vmul.f32 %v439, %v516
        %v552 = vmul.f32 %v440, %v518
        %v553 = vmul.f32 %v441, %v520
        %v554 = vmul.f32 %v442, %v522
        %v555 = vld [vmem:[%s3] sm:$0xff]
        %v556 = vld [vmem:[%s4] sm:$0xff]
        %558 = vset.pattern.permute.xlu0 0
        %559 = vperm.xlu0 %558, %v556
        %v560 = vpop.permute.xlu0 %559
        %vm562 = vcmask 523264
        %v564 = vsel %vm562, %v555, 0
        %v567 = vsel %vm562, %v539, 0
        %v570 = vsel %vm562, %v540, 0
        %v573 = vsel %vm562, %v541, 0
        %v576 = vsel %vm562, %v542, 0
        %v579 = vsel %vm562, %v543, 0
        %v582 = vsel %vm562, %v544, 0
        %v585 = vsel %vm562, %v545, 0
        %v588 = vsel %vm562, %v546, 0
        %v591 = vsel %vm562, %v547, 0
        %v594 = vsel %vm562, %v548, 0
        %v597 = vsel %vm562, %v549, 0
        %v600 = vsel %vm562, %v550, 0
        %v603 = vsel %vm562, %v551, 0
        %v606 = vsel %vm562, %v552, 0
        %v609 = vsel %vm562, %v553, 0
        %v612 = vsel %vm562, %v554, 0
        %614 = vmatprep.subr.mxu0 0.0
        %615 = vmatpush1.xpose.msra.mxu0 %v612
        %616 = vmatprep.subr.mxu0 0.0
        %617 = vmatpush1.xpose.msra.mxu0 %v609
        %618 = vmatprep.subr.mxu0 0.0
        %619 = vmatpush1.xpose.msra.mxu0 %v606
        %620 = vmatprep.subr.mxu0 0.0
        %621 = vmatpush1.xpose.msra.mxu0 %v603
        %622 = vmatprep.subr.mxu0 0.0
        %623 = vmatpush1.xpose.msra.mxu0 %v600
        %624 = vmatprep.subr.mxu0 0.0
        %625 = vmatpush1.xpose.msra.mxu0 %v597
        %626 = vmatprep.subr.mxu0 0.0
        %627 = vmatpush1.xpose.msra.mxu0 %v594
        %628 = vmatprep.subr.mxu0 0.0
        %629 = vmatpush1.xpose.msra.mxu0 %v591
        %630 = vmatprep.subr.mxu0 0.0
        %631 = vmatpush1.xpose.msra.mxu0 %v588
        %632 = vmatprep.subr.mxu0 0.0
        %633 = vmatpush1.xpose.msra.mxu0 %v585
        %634 = vmatprep.subr.mxu0 0.0
        %635 = vmatpush1.xpose.msra.mxu0 %v582
        %636 = vmatprep.subr.mxu0 0.0
        %637 = vmatpush1.xpose.msra.mxu0 %v579
        %638 = vmatprep.subr.mxu0 0.0
        %639 = vmatpush1.xpose.msra.mxu0 %v576
        %640 = vmatprep.subr.mxu0 0.0
        %641 = vmatpush1.xpose.msra.mxu0 %v573
        %642 = vmatprep.subr.mxu0 0.0
        %643 = vmatpush1.xpose.msra.mxu0 %v570
        %644 = vmatprep.subr.mxu0 0.0
        %645 = vmatpush1.xpose.msra.mxu0 %v567
        %646 = vmatprep.subr.mxu0 0.0
        %647 = vmatpush2.xpose.msra.mxu0 0.0
        %648 = vmatprep.subr.mxu0 0.0
        %649 = vmatpush2.xpose.msra.mxu0 0.0
        %650 = vmatprep.subr.mxu0 0.0
        %651 = vmatpush2.xpose.msra.mxu0 0.0
        %652 = vmatprep.subr.mxu0 0.0
        %653 = vmatpush2.xpose.msra.mxu0 0.0
        %654 = vmatprep.subr.mxu0 0.0
        %655 = vmatpush2.xpose.msra.mxu0 0.0
        %656 = vmatprep.subr.mxu0 0.0
        %657 = vmatpush2.xpose.msra.mxu0 0.0
        %658 = vmatprep.subr.mxu0 0.0
        %659 = vmatpush2.xpose.msra.mxu0 0.0
        %660 = vmatprep.subr.mxu0 0.0
        %661 = vmatpush2.xpose.msra.mxu0 0.0
        %662 = vmatprep.subr.mxu0 0.0
        %663 = vmatpush2.xpose.msra.mxu0 0.0
        %664 = vmatprep.subr.mxu0 0.0
        %665 = vmatpush2.xpose.msra.mxu0 0.0
        %666 = vmatprep.subr.mxu0 0.0
        %667 = vmatpush2.xpose.msra.mxu0 0.0
        %668 = vmatprep.subr.mxu0 0.0
        %669 = vmatpush2.xpose.msra.mxu0 0.0
        %670 = vmatprep.subr.mxu0 0.0
        %671 = vmatpush2.xpose.msra.mxu0 0.0
        %672 = vmatprep.subr.mxu0 0.0
        %673 = vmatpush2.xpose.msra.mxu0 0.0
        %674 = vmatprep.subr.mxu0 0.0
        %675 = vmatpush2.xpose.msra.mxu0 0.0
        %676 = vmatprep.subr.mxu0 0.0
        %677 = vmatpush2.xpose.msra.mxu0 0.0
        %678 = vmatprep.mubr.f32.mxu0 0.0
        %679 = vmatmul.mubr.f32.gmra.mxu0 %v564
        %v680 = vpop.f32.mrf.mxu0
        %v681 = vadd.f32 %v560, %v680
        %v682 = vpop.f32.mrf.mxu0
        %683 = vdwg.mxu0
        %684 = vst [vmem:[%s218] sm:$0xff] %v681
        %s685 = sand.u32 %s137, 1
        %s686 = scalar_lea.sflag [#allocation3], %s685
        %s687 = sand.u32 %s137, 1
        %s688 = smul.addr %s687, 8
        %s689 = scalar_lea.vmem [#allocation2], %s688
        // Predicated region
        $region41: #{tpu_custom_call.1} parent=39 // pred_check
          %p690 = pneg %p147
        $region42: #{tpu_custom_call.1} parent=39 // pred_check_branch
          %692 = sbr.rel (%p690) target = $region44
        $region43: #{tpu_custom_call.1} parent=39 // pred_region
          %s694 = ssub.s32 128, 128
          %695 = vsyncadd %s686, %s694
          %s696 = smul.addr %s19, 128
          %s697 = scalar_lea.hbm %s5, %s696
          %s699 = sshll.u32 %s689, 4
          %s700 = int_to_ptr.vmem [resolvable:$true] %s699
          %702 = dma.vmem_to_hbm [thread:$0]  %s700, 128, %s697, %s686
        $region44: #{tpu_custom_call.1} parent=39 // pred_fallthru
          _
      $region40: #{tpu_custom_call.1} parent=5 // pred_fallthru
        _
      %p703 = scmp.le.s32.totalorder 2, %s14
      // Predicated region
      $region45: #{tpu_custom_call.1} parent=5 // pred_check
        %p704 = pneg %p703
      $region46: #{tpu_custom_call.1} parent=5 // pred_check_branch
        %706 = sbr.rel (%p704) target = $region48
      $region47: #{tpu_custom_call.1} parent=5 // pred_region
        %s707 = ssub.s32 %s14, 2
        // Predicated region
        $region49: #{tpu_custom_call.1} parent=47 // pred_check
          %p708 = pneg %p153
        $region50: #{tpu_custom_call.1} parent=47 // pred_check_branch
          %710 = sbr.rel (%p708) target = $region52
        $region51: #{tpu_custom_call.1} parent=47 // pred_region
          %s711 = sand.u32 %s138, 1
          %s712 = scalar_lea.sflag [#allocation3], %s711
          %s713 = sand.u32 %s138, 1
          %s714 = smul.addr %s713, 8
          %s715 = scalar_lea.vmem [#allocation2], %s714
          %716 = dma.done %s712, 128
        $region52: #{tpu_custom_call.1} parent=47 // pred_fallthru
          _
      $region48: #{tpu_custom_call.1} parent=5 // pred_fallthru
        _
    $region6: #{tpu_custom_call.1} parent=1 // loop_footer
      %s18 = sadd.s32 1, %s14
    $region7: #{tpu_custom_call.1} parent=1 // loop_footer_branch
      %13 = sbr.rel target = $region3
    $region8: #{tpu_custom_call.1} parent=1 // loop_exit
      _
    %717 = vsyncpa [#allocation3], 1
    %s718 = scalar_lea.sflag [#allocation3], 1
    %719 = vsyncpa %s718, 1

</llo_original>
